<compile_context>
chip_gen: v7x
topology: tpu7x:2x2x1
jax: 0.10.0
libtpu: 0.0.40
codegen_flags: <defaults>
</compile_context>

<pallas_src>
import functools

import jax
import jax.numpy as jnp
from jax.experimental import pallas as pl
from jax.experimental.pallas import tpu as pltpu


def eos_kernel(ctx_ref, winf_ref, mask_ref, ctr_ref, wb_ref,
               s_ref, st_ref, p_ref, pt_ref, wctx_ref, weos_ref, lb_ref,
               out_ref):
    f32 = jnp.float32
    ctx = ctx_ref[...].astype(f32)                   # (TB, 4H)
    winf = winf_ref[...].astype(f32)                 # (TB, W*E) lane-dense flat window
    mask = mask_ref[...].astype(jnp.int32) > 0       # (TB, W)   bool (int8 in HBM)
    ctr = ctr_ref[...].astype(f32)                   # (TB, E)
    wb = wb_ref[...].astype(f32)                     # (E, E)
    S = s_ref[...]                                   # (J, W) 0/1: segment-sum over e
    St = st_ref[...]                                 # (W, J)      broadcast over e
    P = p_ref[...]                                   # (J, E) 0/1: segment-sum over w
    Pt = pt_ref[...]                                 # (E, J)      broadcast over w

    # Bilinear attention energies: e[b, w] = ctr[b] @ Wb @ window[b, w].
    tmp = jnp.dot(ctr, wb, preferred_element_type=f32)               # (TB, E)  MXU
    tmp_flat = jnp.dot(tmp, Pt, preferred_element_type=f32)          # (TB, J)  MXU broadcast
    prod = tmp_flat * winf                                           # (TB, J)  full-lane VPU
    scores = jnp.dot(prod, S, preferred_element_type=f32)            # (TB, W)  MXU segment sum

    # Masked, max-shifted softmax over the window (matches the PyTorch module).
    neg_inf = f32(-jnp.inf)
    scores = jnp.where(mask, scores, neg_inf)                        # masked_fill(~mask, -inf)
    mx = jnp.max(scores, axis=1, keepdims=True)                      # amax over window
    shifted = jnp.where(mask, scores - mx, scores)                   # masked slots stay -inf
    ex = jnp.exp(shifted)                                            # exp(-inf) = 0
    denom = jnp.sum(ex, axis=1, keepdims=True)
    # approx=True would route to the (idle) EUP; kept exact for 1e-5 vs fp32 ref.
    at = ex * pl.reciprocal(denom, approx=False)                     # softmax over window
    at = jnp.where(mask, at, 0.0)                                    # masked_fill(~mask, 0)

    # context_eos[b, e] = sum_w at[b, w] * window[b, w, e]
    at_flat = jnp.dot(at, St, preferred_element_type=f32)            # (TB, J)  MXU broadcast
    ctx_eos = jnp.dot(at_flat * winf, P, preferred_element_type=f32)  # (TB, E) MXU segment sum

    # Final linear on cat([context_info, context_eos], dim=1), realised as two MXU
    # dots with the batch on the LANE axis of the result -> lane-dense (1, TB) store.
    w_ctx = wctx_ref[...].astype(f32)                                # (1, 4H)
    w_eos = weos_ref[...].astype(f32)                                # (1, E)
    logits = (jnp.einsum('od,bd->ob', w_ctx, ctx, preferred_element_type=f32)
              + jnp.einsum('oe,be->ob', w_eos, ctx_eos, preferred_element_type=f32)
              + lb_ref[0, 0])                                        # (1, TB)
    out_ref[...] = logits.astype(out_ref.dtype)


def _default_block_b(B):
    """Batch tile: whole array for small B; otherwise a lane-dense multiple of 128,
    capped at 1024 and sized so the grid has >= 2 steps (v7x dual-TC sharding).
    Multiples of 128 also satisfy the int8 mask's 32-row sublane minimum."""
    if B <= 128:
        return B
    half = -(-B // 2)                  # ceil(B / 2)
    bb = -(-half // 128) * 128         # round up to a multiple of 128
    return min(1024, bb)


@functools.partial(jax.jit, static_argnames=("block_b",))
def eos_generator(context_info, window, window_mask, ctr, w_bilinear, lin_w, lin_b,
                  *, block_b=None):
    B, W, E = window.shape
    D4H = context_info.shape[1]
    J = W * E

    if block_b is None:
        block_b = _default_block_b(B)
    nb = pl.cdiv(B, block_b)
    # NOTE: B is NOT padded.  Ragged tail blocks rely on Pallas boundary handling:
    # out-of-bounds input rows read unspecified values (purely per-row work) and the
    # out-of-bounds lanes of the (1, block_b) output block are discarded by the
    # masked partial store — no extra HBM pass over `window` just for padding.

    win_flat = window.reshape(B, J)                  # free, contiguous reshape
    mask_i8 = window_mask.astype(jnp.int8)           # 4x fewer HBM bytes than int32

    # Tiny constant 0/1 matrices (VMEM-resident, fetched once thanks to the
    # constant index_maps):
    #   S [j, w] = (j // E == w)  : sums each E-chunk of the flat axis -> scores
    #   P [j, e] = (j %  E == e)  : sums over window positions         -> context_eos
    #   St, Pt   = transposes     : broadcast (TB, W)/(TB, E) into the flat layout
    j_idx = jnp.arange(J)
    S = (j_idx[:, None] // E == jnp.arange(W)[None, :]).astype(jnp.float32)
    P = (j_idx[:, None] % E == jnp.arange(E)[None, :]).astype(jnp.float32)
    St = S.T
    Pt = P.T

    w_ctx = lin_w[:, :D4H]                           # (1, 4H)
    w_eos = lin_w[:, D4H:]                           # (1, E)
    lb = jnp.reshape(lin_b, (1, 1)).astype(jnp.float32)

    itemsize = window.dtype.itemsize
    cost = pl.CostEstimate(
        flops=int(2 * B * (E * E + 2 * E * J + 2 * W * J + D4H + E)),
        transcendentals=int(B * W),
        bytes_accessed=int(itemsize * B * (D4H + J + E) + B * W + 4 * B),
    )

    out = pl.pallas_call(
        eos_kernel,
        out_shape=jax.ShapeDtypeStruct((1, B), jnp.float32),
        grid=(nb,),
        in_specs=[
            pl.BlockSpec((block_b, D4H), lambda i: (i, 0)),        # context_info (tiled)
            pl.BlockSpec((block_b, J), lambda i: (i, 0)),          # window, flat (tiled)
            pl.BlockSpec((block_b, W), lambda i: (i, 0)),          # mask int8    (tiled)
            pl.BlockSpec((block_b, E), lambda i: (i, 0)),          # ctr          (tiled)
            pl.BlockSpec((E, E), lambda i: (0, 0)),                # w_bilinear   (resident)
            pl.BlockSpec((J, W), lambda i: (0, 0)),                # S            (resident)
            pl.BlockSpec((W, J), lambda i: (0, 0)),                # St           (resident)
            pl.BlockSpec((J, E), lambda i: (0, 0)),                # P            (resident)
            pl.BlockSpec((E, J), lambda i: (0, 0)),                # Pt           (resident)
            pl.BlockSpec((1, D4H), lambda i: (0, 0)),              # w_ctx        (resident)
            pl.BlockSpec((1, E), lambda i: (0, 0)),                # w_eos        (resident)
            pl.BlockSpec(memory_space=pltpu.MemorySpace.SMEM),     # lin_b scalar (SMEM)
        ],
        out_specs=pl.BlockSpec((1, block_b), lambda i: (0, i)),    # lane-dense logits row
        compiler_params=pltpu.CompilerParams(
            dimension_semantics=("parallel",),    # shards batch grid across TCs on v7x
            vmem_limit_bytes=48 * 1024 * 1024,    # ample for flat layout; < v7x 64 MiB VMEM
        ),
        cost_estimate=cost,
    )(context_info, win_flat, mask_i8, ctr, w_bilinear, S, St, P, Pt, w_ctx, w_eos, lb)

    return out[0, :][:, None]                        # (B, 1), matching the PyTorch module


def ref_forward(context_info, window, window_mask, ctr, w_bilinear, lin_w, lin_b):
    """Pure-JAX mirror of the PyTorch forward (for correctness check)."""
    scores = jnp.einsum('be,ef,bwf->bw', ctr, w_bilinear, window)
    e = jnp.where(window_mask, scores, -jnp.inf)
    mx = jnp.max(e, axis=1, keepdims=True)
    e = e - jnp.where(window_mask, mx, 0.0)
    at = jax.nn.softmax(e, axis=1)
    at = jnp.where(window_mask, at, 0.0)
    ctx_eos = jnp.einsum('bw,bwe->be', at, window)
    cat = jnp.concatenate([context_info, ctx_eos], axis=1)
    return cat @ lin_w.T + lin_b


if __name__ == "__main__":
    # Small shapes consistent with the module:
    B = 2                  # batch
    E = 32                 # config.summarizer_emb_dim
    H = 8                  # config.hidden_dim -> context_info is (B, 4H)
    W = 8                  # window length

    key = jax.random.PRNGKey(0)
    k1, k2, k3, k4, k5, k6, k7 = jax.random.split(key, 7)

    context_info = jax.random.normal(k1, (B, 4 * H), dtype=jnp.float32)
    window = jax.random.normal(k2, (B, W, E), dtype=jnp.float32)
    ctr = jax.random.normal(k3, (B, E), dtype=jnp.float32)
    lengths = jnp.array([W, 5])
    window_mask = jnp.arange(W)[None, :] < lengths[:, None]      # (B, W) bool

    # Deterministic parameter init (shapes from __init__; synthetic, not a checkpoint).
    w_bilinear = jax.random.normal(k4, (E, E), dtype=jnp.float32) * 0.1   # Bilinear weight[0]
    lin_w = jax.random.normal(k5, (1, 4 * H + E), dtype=jnp.float32) * 0.1
    lin_b = jax.random.normal(k6, (1, 1), dtype=jnp.float32) * 0.1

    out = jax.block_until_ready(
        eos_generator(context_info, window, window_mask, ctr, w_bilinear, lin_w, lin_b))
    ref = ref_forward(context_info, window, window_mask, ctr, w_bilinear, lin_w, lin_b)
    assert out.shape == (B, 1), out.shape
    assert jnp.allclose(out, ref, atol=1e-5, rtol=1e-5), (out, ref)

    # Secondary check: batch larger than one tile -> multi-block grid with a ragged
    # (boundary) final block, using the default block_b derivation (256 here, nb=2).
    B2 = 260
    ci2 = jax.random.normal(k7, (B2, 4 * H), dtype=jnp.float32)
    win2 = jax.random.normal(k1, (B2, W, E), dtype=jnp.float32)
    ctr2 = jax.random.normal(k2, (B2, E), dtype=jnp.float32)
    len2 = 1 + (jnp.arange(B2) % W)
    mask2 = jnp.arange(W)[None, :] < len2[:, None]
    out2 = jax.block_until_ready(
        eos_generator(ci2, win2, mask2, ctr2, w_bilinear, lin_w, lin_b))
    ref2 = ref_forward(ci2, win2, mask2, ctr2, w_bilinear, lin_w, lin_b)
    assert out2.shape == (B2, 1), out2.shape
    assert jnp.allclose(out2, ref2, atol=1e-4, rtol=1e-4), float(jnp.max(jnp.abs(out2 - ref2)))

    print("KERNEL_OK")
</pallas_src>

<mosaic_0001>
module attributes {stable_mosaic.version = 11 : i64} {
  func.func @eos_kernel(%arg0: i32, %arg1: memref<2x32xf32, #tpu.memory_space<vmem>>, %arg2: memref<2x256xf32, #tpu.memory_space<vmem>>, %arg3: memref<2x8xi8, #tpu.memory_space<vmem>>, %arg4: memref<2x32xf32, #tpu.memory_space<vmem>>, %arg5: memref<32x32xf32, #tpu.memory_space<vmem>>, %arg6: memref<256x8xf32, #tpu.memory_space<vmem>>, %arg7: memref<8x256xf32, #tpu.memory_space<vmem>>, %arg8: memref<256x32xf32, #tpu.memory_space<vmem>>, %arg9: memref<32x256xf32, #tpu.memory_space<vmem>>, %arg10: memref<1x32xf32, #tpu.memory_space<vmem>>, %arg11: memref<1x32xf32, #tpu.memory_space<vmem>>, %arg12: memref<1x1xf32, #tpu.memory_space<smem>>, %arg13: memref<1x2xf32, #tpu.memory_space<vmem>>) attributes {dimension_semantics = [#tpu.dimension_semantics<parallel>], iteration_bounds = array<i64: 1>, scalar_prefetch = 0 : i64, scratch_operands = 0 : i64, tpu.core_type = #tpu.core_type<tc>, window_params = [{transform_indices = @transform_0, window_bounds = array<i64: 2, 32>}, {transform_indices = @transform_1, window_bounds = array<i64: 2, 256>}, {transform_indices = @transform_2, window_bounds = array<i64: 2, 8>}, {transform_indices = @transform_3, window_bounds = array<i64: 2, 32>}, {pipeline_mode = #tpu.pipeline_mode<synchronous>, transform_indices = @transform_4, window_bounds = array<i64: 32, 32>}, {pipeline_mode = #tpu.pipeline_mode<synchronous>, transform_indices = @transform_5, window_bounds = array<i64: 256, 8>}, {pipeline_mode = #tpu.pipeline_mode<synchronous>, transform_indices = @transform_6, window_bounds = array<i64: 8, 256>}, {pipeline_mode = #tpu.pipeline_mode<synchronous>, transform_indices = @transform_7, window_bounds = array<i64: 256, 32>}, {pipeline_mode = #tpu.pipeline_mode<synchronous>, transform_indices = @transform_8, window_bounds = array<i64: 32, 256>}, {pipeline_mode = #tpu.pipeline_mode<synchronous>, transform_indices = @transform_9, window_bounds = array<i64: 1, 32>}, {pipeline_mode = #tpu.pipeline_mode<synchronous>, transform_indices = @transform_10, window_bounds = array<i64: 1, 32>}, {transform_indices = @transform_11, window_bounds = array<i64: 1, 1>}, {transform_indices = @transform_12, window_bounds = array<i64: 1, 2>}]} {
    %c0 = arith.constant 0 : index
    %c0_0 = arith.constant 0 : index
    %0 = vector.load %arg1[%c0, %c0_0] : memref<2x32xf32, #tpu.memory_space<vmem>>, vector<2x32xf32>
    %c0_1 = arith.constant 0 : index
    %c0_2 = arith.constant 0 : index
    %1 = vector.load %arg2[%c0_1, %c0_2] : memref<2x256xf32, #tpu.memory_space<vmem>>, vector<2x256xf32>
    %c0_3 = arith.constant 0 : index
    %c0_4 = arith.constant 0 : index
    %2 = vector.load %arg3[%c0_3, %c0_4] : memref<2x8xi8, #tpu.memory_space<vmem>>, vector<2x8xi8>
    %3 = arith.extsi %2 : vector<2x8xi8> to vector<2x8xi32>
    %c0_i32 = arith.constant 0 : i32
    %4 = vector.broadcast %c0_i32 : i32 to vector<2x8xi32>
    %5 = arith.cmpi sgt, %3, %4 : vector<2x8xi32>
    %c0_5 = arith.constant 0 : index
    %c0_6 = arith.constant 0 : index
    %6 = vector.load %arg4[%c0_5, %c0_6] : memref<2x32xf32, #tpu.memory_space<vmem>>, vector<2x32xf32>
    %c0_7 = arith.constant 0 : index
    %c0_8 = arith.constant 0 : index
    %7 = vector.load %arg5[%c0_7, %c0_8] : memref<32x32xf32, #tpu.memory_space<vmem>>, vector<32x32xf32>
    %c0_9 = arith.constant 0 : index
    %c0_10 = arith.constant 0 : index
    %8 = vector.load %arg6[%c0_9, %c0_10] : memref<256x8xf32, #tpu.memory_space<vmem>>, vector<256x8xf32>
    %c0_11 = arith.constant 0 : index
    %c0_12 = arith.constant 0 : index
    %9 = vector.load %arg7[%c0_11, %c0_12] : memref<8x256xf32, #tpu.memory_space<vmem>>, vector<8x256xf32>
    %c0_13 = arith.constant 0 : index
    %c0_14 = arith.constant 0 : index
    %10 = vector.load %arg8[%c0_13, %c0_14] : memref<256x32xf32, #tpu.memory_space<vmem>>, vector<256x32xf32>
    %c0_15 = arith.constant 0 : index
    %c0_16 = arith.constant 0 : index
    %11 = vector.load %arg9[%c0_15, %c0_16] : memref<32x256xf32, #tpu.memory_space<vmem>>, vector<32x256xf32>
    %cst = arith.constant dense<0.000000e+00> : vector<2x32xf32>
    %12 = tpu.matmul %6, %7, %cst {dimension_numbers = #tpu.dot_dimension_numbers<[1], [0], [0], [1], [0, 0, 1, 1], [], []>} : vector<2x32xf32>, vector<32x32xf32>, vector<2x32xf32> -> vector<2x32xf32>
    %cst_17 = arith.constant dense<0.000000e+00> : vector<2x256xf32>
    %13 = tpu.matmul %12, %11, %cst_17 {dimension_numbers = #tpu.dot_dimension_numbers<[1], [0], [0], [1], [0, 0, 1, 1], [], []>} : vector<2x32xf32>, vector<32x256xf32>, vector<2x256xf32> -> vector<2x256xf32>
    %14 = arith.mulf %13, %1 : vector<2x256xf32>
    %cst_18 = arith.constant dense<0.000000e+00> : vector<2x8xf32>
    %15 = tpu.matmul %14, %8, %cst_18 {dimension_numbers = #tpu.dot_dimension_numbers<[1], [0], [0], [1], [0, 0, 1, 1], [], []>} : vector<2x256xf32>, vector<256x8xf32>, vector<2x8xf32> -> vector<2x8xf32>
    %cst_19 = arith.constant 0xFF800000 : f32
    %16 = vector.broadcast %cst_19 : f32 to vector<2x8xf32>
    %17 = arith.select %5, %15, %16 : vector<2x8xi1>, vector<2x8xf32>
    %cst_20 = arith.constant dense<0xFF800000> : vector<2xf32>
    %18 = vector.multi_reduction <maximumf>, %17, %cst_20 [1] : vector<2x8xf32> to vector<2xf32>
    %19 = vector.shape_cast %18 : vector<2xf32> to vector<2x1xf32>
    %20 = vector.broadcast %19 : vector<2x1xf32> to vector<2x8xf32>
    %21 = arith.subf %17, %20 : vector<2x8xf32>
    %22 = arith.select %5, %21, %17 : vector<2x8xi1>, vector<2x8xf32>
    %23 = math.exp %22 : vector<2x8xf32>
    %cst_21 = arith.constant dense<0.000000e+00> : vector<2xf32>
    %24 = vector.multi_reduction <add>, %23, %cst_21 [1] : vector<2x8xf32> to vector<2xf32>
    %25 = vector.shape_cast %24 : vector<2xf32> to vector<2x1xf32>
    %26 = tpu.reciprocal %25 : vector<2x1xf32> -> vector<2x1xf32>
    %27 = vector.broadcast %26 : vector<2x1xf32> to vector<2x8xf32>
    %28 = arith.mulf %23, %27 : vector<2x8xf32>
    %cst_22 = arith.constant 0.000000e+00 : f32
    %29 = vector.broadcast %cst_22 : f32 to vector<2x8xf32>
    %30 = arith.select %5, %28, %29 : vector<2x8xi1>, vector<2x8xf32>
    %cst_23 = arith.constant dense<0.000000e+00> : vector<2x256xf32>
    %31 = tpu.matmul %30, %9, %cst_23 {dimension_numbers = #tpu.dot_dimension_numbers<[1], [0], [0], [1], [0, 0, 1, 1], [], []>} : vector<2x8xf32>, vector<8x256xf32>, vector<2x256xf32> -> vector<2x256xf32>
    %32 = arith.mulf %31, %1 : vector<2x256xf32>
    %cst_24 = arith.constant dense<0.000000e+00> : vector<2x32xf32>
    %33 = tpu.matmul %32, %10, %cst_24 {dimension_numbers = #tpu.dot_dimension_numbers<[1], [0], [0], [1], [0, 0, 1, 1], [], []>} : vector<2x256xf32>, vector<256x32xf32>, vector<2x32xf32> -> vector<2x32xf32>
    %c0_25 = arith.constant 0 : index
    %c0_26 = arith.constant 0 : index
    %34 = vector.load %arg10[%c0_25, %c0_26] : memref<1x32xf32, #tpu.memory_space<vmem>>, vector<1x32xf32>
    %c0_27 = arith.constant 0 : index
    %c0_28 = arith.constant 0 : index
    %35 = vector.load %arg11[%c0_27, %c0_28] : memref<1x32xf32, #tpu.memory_space<vmem>>, vector<1x32xf32>
    "tpu.trace_start"() <{level = 10 : i32, message = "od,bd->ob"}> : () -> ()
    %cst_29 = arith.constant dense<0.000000e+00> : vector<1x2xf32>
    %36 = tpu.matmul %34, %0, %cst_29 {dimension_numbers = #tpu.dot_dimension_numbers<[1], [1], [0], [0], [0, 0, 1, 0], [], []>} : vector<1x32xf32>, vector<2x32xf32>, vector<1x2xf32> -> vector<1x2xf32>
    "tpu.trace_stop"() : () -> ()
    "tpu.trace_start"() <{level = 10 : i32, message = "oe,be->ob"}> : () -> ()
    %cst_30 = arith.constant dense<0.000000e+00> : vector<1x2xf32>
    %37 = tpu.matmul %35, %33, %cst_30 {dimension_numbers = #tpu.dot_dimension_numbers<[1], [1], [0], [0], [0, 0, 1, 0], [], []>} : vector<1x32xf32>, vector<2x32xf32>, vector<1x2xf32> -> vector<1x2xf32>
    "tpu.trace_stop"() : () -> ()
    %38 = arith.addf %36, %37 : vector<1x2xf32>
    %c0_31 = arith.constant 0 : index
    %c0_32 = arith.constant 0 : index
    %39 = memref.load %arg12[%c0_31, %c0_32] : memref<1x1xf32, #tpu.memory_space<smem>>
    %40 = vector.broadcast %39 : f32 to vector<1x2xf32>
    %41 = arith.addf %38, %40 : vector<1x2xf32>
    %c0_33 = arith.constant 0 : index
    %c0_34 = arith.constant 0 : index
    %42 = vector.load %arg13[%c0_33, %c0_34] : memref<1x2xf32, #tpu.memory_space<vmem>>, vector<1x2xf32>
    tpu.vector_store %arg13[%c0_33, %c0_34], %41 {strides = array<i32>} : memref<1x2xf32, #tpu.memory_space<vmem>>, vector<1x2xf32>,
    return
  }
  func.func @transform_0(%arg0: i32) -> (i32, i32) {
    %c0_i32 = arith.constant 0 : i32
    %c0_i32_0 = arith.constant 0 : i32
    return %arg0, %c0_i32 : i32, i32
  }
  func.func @transform_1(%arg0: i32) -> (i32, i32) {
    %c0_i32 = arith.constant 0 : i32
    %c0_i32_0 = arith.constant 0 : i32
    return %arg0, %c0_i32 : i32, i32
  }
  func.func @transform_2(%arg0: i32) -> (i32, i32) {
    %c0_i32 = arith.constant 0 : i32
    %c0_i32_0 = arith.constant 0 : i32
    return %arg0, %c0_i32 : i32, i32
  }
  func.func @transform_3(%arg0: i32) -> (i32, i32) {
    %c0_i32 = arith.constant 0 : i32
    %c0_i32_0 = arith.constant 0 : i32
    return %arg0, %c0_i32 : i32, i32
  }
  func.func @transform_4(%arg0: i32) -> (i32, i32) {
    %c0_i32 = arith.constant 0 : i32
    %c0_i32_0 = arith.constant 0 : i32
    %c0_i32_1 = arith.constant 0 : i32
    return %c0_i32, %c0_i32_0 : i32, i32
  }
  func.func @transform_5(%arg0: i32) -> (i32, i32) {
    %c0_i32 = arith.constant 0 : i32
    %c0_i32_0 = arith.constant 0 : i32
    %c0_i32_1 = arith.constant 0 : i32
    return %c0_i32, %c0_i32_0 : i32, i32
  }
  func.func @transform_6(%arg0: i32) -> (i32, i32) {
    %c0_i32 = arith.constant 0 : i32
    %c0_i32_0 = arith.constant 0 : i32
    %c0_i32_1 = arith.constant 0 : i32
    return %c0_i32, %c0_i32_0 : i32, i32
  }
  func.func @transform_7(%arg0: i32) -> (i32, i32) {
    %c0_i32 = arith.constant 0 : i32
    %c0_i32_0 = arith.constant 0 : i32
    %c0_i32_1 = arith.constant 0 : i32
    return %c0_i32, %c0_i32_0 : i32, i32
  }
  func.func @transform_8(%arg0: i32) -> (i32, i32) {
    %c0_i32 = arith.constant 0 : i32
    %c0_i32_0 = arith.constant 0 : i32
    %c0_i32_1 = arith.constant 0 : i32
    return %c0_i32, %c0_i32_0 : i32, i32
  }
  func.func @transform_9(%arg0: i32) -> (i32, i32) {
    %c0_i32 = arith.constant 0 : i32
    %c0_i32_0 = arith.constant 0 : i32
    %c0_i32_1 = arith.constant 0 : i32
    return %c0_i32, %c0_i32_0 : i32, i32
  }
  func.func @transform_10(%arg0: i32) -> (i32, i32) {
    %c0_i32 = arith.constant 0 : i32
    %c0_i32_0 = arith.constant 0 : i32
    %c0_i32_1 = arith.constant 0 : i32
    return %c0_i32, %c0_i32_0 : i32, i32
  }
  func.func @transform_11(%arg0: i32) -> (i32, i32) {
    %c0_i32 = arith.constant 0 : i32
    %c0_i32_0 = arith.constant 0 : i32
    %c0_i32_1 = arith.constant 0 : i32
    return %c0_i32, %c0_i32_0 : i32, i32
  }
  func.func @transform_12(%arg0: i32) -> (i32, i32) {
    %c0_i32 = arith.constant 0 : i32
    %c0_i32_0 = arith.constant 0 : i32
    return %c0_i32, %arg0 : i32, i32
  }
}

</mosaic_0001>

<llo_original>
// kernel: eos_generator.1
$region0: #{eos_generator.1}
  #allocation0 [shape = 'u32[]', space=smem, size = 0x4, offset = 0x4, fixed_abs, tag = 'smem constant byte address 0x4 - core index']
  #allocation1 [shape = 'u32[144,128]{1,0:T(1,128)}', space=vmem, size = 0x12000, scoped, tag = 'internal scratch']
  #allocation2 [shape = 'f32[1,1]{1,0:T(1,128)S(6)}', space=smem, size = 0x200, scoped, tag = 'scoped memory for eos_generator.1']
  %s0 = inlined_call_operand.vmem [shape: f32[2,32], index: 0, kind: input, shape index: {}]
  %s1 = inlined_call_operand.vmem [shape: f32[2,256], index: 1, kind: input, shape index: {}]
  %s2 = inlined_call_operand.vmem [shape: s8[2,8], index: 2, kind: input, shape index: {}]
  %s3 = inlined_call_operand.vmem [shape: f32[2,32], index: 3, kind: input, shape index: {}]
  %s4 = inlined_call_operand.vmem [shape: f32[32,32], index: 4, kind: input, shape index: {}]
  %s5 = inlined_call_operand.vmem [shape: f32[256,8], index: 5, kind: input, shape index: {}]
  %s6 = inlined_call_operand.vmem [shape: f32[8,256], index: 6, kind: input, shape index: {}]
  %s7 = inlined_call_operand.vmem [shape: f32[256,32], index: 7, kind: input, shape index: {}]
  %s8 = inlined_call_operand.vmem [shape: f32[32,256], index: 8, kind: input, shape index: {}]
  %s9 = inlined_call_operand.vmem [shape: f32[1,32], index: 9, kind: input, shape index: {}]
  %s10 = inlined_call_operand.vmem [shape: f32[1,32], index: 10, kind: input, shape index: {}]
  %s11 = inlined_call_operand.<no memory space> [shape: f32[1,1], index: 11, kind: input, shape index: {}]
  %s12 = inlined_call_operand.hbm [shape: f32[1,2], index: 12, kind: output, shape index: {}]
  %s13 = sld [smem:[#allocation0]]
  $region58: #{eos_generator.1} parent=0
    _
  %s15 = ssub.s32 1, %s13
  %s16 = scalar_select 0, %s15, %s13
  %17 = sst [smem:[#allocation2]] %s11
  $region1: #{eos_generator.1} parent=0
    #allocation3 [shape = 'u8[512]{0}', space=vmem, size = 0x400, scoped, tag = 'output window, operand 0, single buffered']
    #allocation4 [shape = 's32[1]{0}', space=sflag, size = 0x4, scoped, tag = 'scoped memory for eos_generator.1']
    %18 = vsyncpa [#allocation4], 0
    // Predicated region
    $region2: #{eos_generator.1} parent=1 // pred_check
      _
    $region3: #{eos_generator.1} parent=1 // pred_check_branch
      %20 = sbr.rel (0) target = $region5
    $region4: #{eos_generator.1} parent=1 // pred_region
      _
    $region5: #{eos_generator.1} parent=1 // pred_fallthru
      _
    // Predicated region
    $region6: #{eos_generator.1} parent=1 // pred_check
      _
    $region7: #{eos_generator.1} parent=1 // pred_check_branch
      %22 = sbr.rel (0) target = $region9
    $region8: #{eos_generator.1} parent=1 // pred_region
      _
    $region9: #{eos_generator.1} parent=1 // pred_fallthru
      _
    // Predicated region
    $region10: #{eos_generator.1} parent=1 // pred_check
      _
    $region11: #{eos_generator.1} parent=1 // pred_check_branch
      %24 = sbr.rel (0) target = $region13
    $region12: #{eos_generator.1} parent=1 // pred_region
      _
    $region13: #{eos_generator.1} parent=1 // pred_fallthru
      _
    // Predicated region
    $region14: #{eos_generator.1} parent=1 // pred_check
      _
    $region15: #{eos_generator.1} parent=1 // pred_check_branch
      %26 = sbr.rel (0) target = $region17
    $region16: #{eos_generator.1} parent=1 // pred_region
      _
    $region17: #{eos_generator.1} parent=1 // pred_fallthru
      _
    // Predicated region
    $region18: #{eos_generator.1} parent=1 // pred_check
      _
    $region19: #{eos_generator.1} parent=1 // pred_check_branch
      %28 = sbr.rel (0) target = $region21
    $region20: #{eos_generator.1} parent=1 // pred_region
      _
    $region21: #{eos_generator.1} parent=1 // pred_fallthru
      _
    // Predicated region
    $region22: #{eos_generator.1} parent=1 // pred_check
      _
    $region23: #{eos_generator.1} parent=1 // pred_check_branch
      %30 = sbr.rel (0) target = $region25
    $region24: #{eos_generator.1} parent=1 // pred_region
      _
    $region25: #{eos_generator.1} parent=1 // pred_fallthru
      _
    // Predicated region
    $region26: #{eos_generator.1} parent=1 // pred_check
      _
    $region27: #{eos_generator.1} parent=1 // pred_check_branch
      %32 = sbr.rel (0) target = $region29
    $region28: #{eos_generator.1} parent=1 // pred_region
      _
    $region29: #{eos_generator.1} parent=1 // pred_fallthru
      _
    // Predicated region
    $region30: #{eos_generator.1} parent=1 // pred_check
      _
    $region31: #{eos_generator.1} parent=1 // pred_check_branch
      %34 = sbr.rel (0) target = $region33
    $region32: #{eos_generator.1} parent=1 // pred_region
      _
    $region33: #{eos_generator.1} parent=1 // pred_fallthru
      _
    // Predicated region
    $region34: #{eos_generator.1} parent=1 // pred_check
      _
    $region35: #{eos_generator.1} parent=1 // pred_check_branch
      %36 = sbr.rel (0) target = $region37
    $region36: #{eos_generator.1} parent=1 // pred_region
      _
    $region37: #{eos_generator.1} parent=1 // pred_fallthru
      _
    // Predicated region
    $region38: #{eos_generator.1} parent=1 // pred_check
      _
    $region39: #{eos_generator.1} parent=1 // pred_check_branch
      %38 = sbr.rel (0) target = $region41
    $region40: #{eos_generator.1} parent=1 // pred_region
      _
    $region41: #{eos_generator.1} parent=1 // pred_fallthru
      _
    // Predicated region
    $region42: #{eos_generator.1} parent=1 // pred_check
      _
    $region43: #{eos_generator.1} parent=1 // pred_check_branch
      %40 = sbr.rel (0) target = $region45
    $region44: #{eos_generator.1} parent=1 // pred_region
      _
    $region45: #{eos_generator.1} parent=1 // pred_fallthru
      _
    // Predicated region
    $region46: #{eos_generator.1} parent=1 // pred_check
      _
    $region47: #{eos_generator.1} parent=1 // pred_check_branch
      %42 = sbr.rel (0) target = $region49
    $region48: #{eos_generator.1} parent=1 // pred_region
      _
    $region49: #{eos_generator.1} parent=1 // pred_fallthru
      _
    %v43 = vld [vmem:[%s0] sm:$0x3]
    %v44 = vld [vmem:[%s1] sm:$0xf]
    %v45 = vld [vmem:[%s2] sm:$0x1]
    %v46 = vunpack.c.0.s8 %v45
    %vm47 = vcmp.gt.s32.totalorder %v46, 0
    %v48 = vld [vmem:[%s3] sm:$0x3]
    %v49 = vld [vmem:[%s4] sm:$0xff]
    %v50 = vld [vmem:[%s4 + $0x8] sm:$0xff]
    %v51 = vld [vmem:[%s4 + $0x10] sm:$0xff]
    %v52 = vld [vmem:[%s4 + $0x18] sm:$0xff]
    %v53 = vld [vmem:[%s5] sm:$0xff]
    %v54 = vld [vmem:[%s5 + $0x8] sm:$0xff]
    %v55 = vld [vmem:[%s5 + $0x10] sm:$0xff]
    %v56 = vld [vmem:[%s5 + $0x18] sm:$0xff]
    %v57 = vld [vmem:[%s5 + $0x20] sm:$0xff]
    %v58 = vld [vmem:[%s5 + $0x28] sm:$0xff]
    %v59 = vld [vmem:[%s5 + $0x30] sm:$0xff]
    %v60 = vld [vmem:[%s5 + $0x38] sm:$0xff]
    %v61 = vld [vmem:[%s5 + $0x40] sm:$0xff]
    %v62 = vld [vmem:[%s5 + $0x48] sm:$0xff]
    %v63 = vld [vmem:[%s5 + $0x50] sm:$0xff]
    %v64 = vld [vmem:[%s5 + $0x58] sm:$0xff]
    %v65 = vld [vmem:[%s5 + $0x60] sm:$0xff]
    %v66 = vld [vmem:[%s5 + $0x68] sm:$0xff]
    %v67 = vld [vmem:[%s5 + $0x70] sm:$0xff]
    %v68 = vld [vmem:[%s5 + $0x78] sm:$0xff]
    %v69 = vld [vmem:[%s5 + $0x80] sm:$0xff]
    %v70 = vld [vmem:[%s5 + $0x88] sm:$0xff]
    %v71 = vld [vmem:[%s5 + $0x90] sm:$0xff]
    %v72 = vld [vmem:[%s5 + $0x98] sm:$0xff]
    %v73 = vld [vmem:[%s5 + $0xa0] sm:$0xff]
    %v74 = vld [vmem:[%s5 + $0xa8] sm:$0xff]
    %v75 = vld [vmem:[%s5 + $0xb0] sm:$0xff]
    %v76 = vld [vmem:[%s5 + $0xb8] sm:$0xff]
    %v77 = vld [vmem:[%s5 + $0xc0] sm:$0xff]
    %v78 = vld [vmem:[%s5 + $0xc8] sm:$0xff]
    %v79 = vld [vmem:[%s5 + $0xd0] sm:$0xff]
    %v80 = vld [vmem:[%s5 + $0xd8] sm:$0xff]
    %v81 = vld [vmem:[%s5 + $0xe0] sm:$0xff]
    %v82 = vld [vmem:[%s5 + $0xe8] sm:$0xff]
    %v83 = vld [vmem:[%s5 + $0xf0] sm:$0xff]
    %v84 = vld [vmem:[%s5 + $0xf8] sm:$0xff]
    %v85 = vld [vmem:[%s6] sm:$0xff]
    %v86 = vld [vmem:[%s6 + $0x8] sm:$0xff]
    %v87 = vld [vmem:[%s7] sm:$0xff]
    %v88 = vld [vmem:[%s7 + $0x8] sm:$0xff]
    %v89 = vld [vmem:[%s7 + $0x10] sm:$0xff]
    %v90 = vld [vmem:[%s7 + $0x18] sm:$0xff]
    %v91 = vld [vmem:[%s7 + $0x20] sm:$0xff]
    %v92 = vld [vmem:[%s7 + $0x28] sm:$0xff]
    %v93 = vld [vmem:[%s7 + $0x30] sm:$0xff]
    %v94 = vld [vmem:[%s7 + $0x38] sm:$0xff]
    %v95 = vld [vmem:[%s7 + $0x40] sm:$0xff]
    %v96 = vld [vmem:[%s7 + $0x48] sm:$0xff]
    %v97 = vld [vmem:[%s7 + $0x50] sm:$0xff]
    %v98 = vld [vmem:[%s7 + $0x58] sm:$0xff]
    %v99 = vld [vmem:[%s7 + $0x60] sm:$0xff]
    %v100 = vld [vmem:[%s7 + $0x68] sm:$0xff]
    %v101 = vld [vmem:[%s7 + $0x70] sm:$0xff]
    %v102 = vld [vmem:[%s7 + $0x78] sm:$0xff]
    %v103 = vld [vmem:[%s7 + $0x80] sm:$0xff]
    %v104 = vld [vmem:[%s7 + $0x88] sm:$0xff]
    %v105 = vld [vmem:[%s7 + $0x90] sm:$0xff]
    %v106 = vld [vmem:[%s7 + $0x98] sm:$0xff]
    %v107 = vld [vmem:[%s7 + $0xa0] sm:$0xff]
    %v108 = vld [vmem:[%s7 + $0xa8] sm:$0xff]
    %v109 = vld [vmem:[%s7 + $0xb0] sm:$0xff]
    %v110 = vld [vmem:[%s7 + $0xb8] sm:$0xff]
    %v111 = vld [vmem:[%s7 + $0xc0] sm:$0xff]
    %v112 = vld [vmem:[%s7 + $0xc8] sm:$0xff]
    %v113 = vld [vmem:[%s7 + $0xd0] sm:$0xff]
    %v114 = vld [vmem:[%s7 + $0xd8] sm:$0xff]
    %v115 = vld [vmem:[%s7 + $0xe0] sm:$0xff]
    %v116 = vld [vmem:[%s7 + $0xe8] sm:$0xff]
    %v117 = vld [vmem:[%s7 + $0xf0] sm:$0xff]
    %v118 = vld [vmem:[%s7 + $0xf8] sm:$0xff]
    %v119 = vld [vmem:[%s8] sm:$0xff]
    %v120 = vld [vmem:[%s8 + $0x8] sm:$0xff]
    %v121 = vld [vmem:[%s8 + $0x10] sm:$0xff]
    %v122 = vld [vmem:[%s8 + $0x18] sm:$0xff]
    %v123 = vld [vmem:[%s8 + $0x20] sm:$0xff]
    %v124 = vld [vmem:[%s8 + $0x28] sm:$0xff]
    %v125 = vld [vmem:[%s8 + $0x30] sm:$0xff]
    %v126 = vld [vmem:[%s8 + $0x38] sm:$0xff]
    %vm127 = vcmask 261120
    %v129 = vsel %vm127, %v48, 0
    %131 = vmatprep.subr.mxu0 0.0
    %132 = vmatpush1.msra.mxu0 %v49
    %133 = vmatprep.subr.mxu0 0.0
    %134 = vmatpush1.msra.mxu0 %v50
    %135 = vmatprep.subr.mxu0 0.0
    %136 = vmatpush1.msra.mxu0 %v51
    %137 = vmatprep.subr.mxu0 0.0
    %138 = vmatpush1.msra.mxu0 %v52
    %139 = vmatprep.subr.mxu0 0.0
    %140 = vmatpush1.msra.mxu0 0.0
    %141 = vmatprep.subr.mxu0 0.0
    %142 = vmatpush1.msra.mxu0 0.0
    %143 = vmatprep.subr.mxu0 0.0
    %144 = vmatpush1.msra.mxu0 0.0
    %145 = vmatprep.subr.mxu0 0.0
    %146 = vmatpush1.msra.mxu0 0.0
    %147 = vmatprep.subr.mxu0 0.0
    %148 = vmatpush1.msra.mxu0 0.0
    %149 = vmatprep.subr.mxu0 0.0
    %150 = vmatpush1.msra.mxu0 0.0
    %151 = vmatprep.subr.mxu0 0.0
    %152 = vmatpush1.msra.mxu0 0.0
    %153 = vmatprep.subr.mxu0 0.0
    %154 = vmatpush1.msra.mxu0 0.0
    %155 = vmatprep.subr.mxu0 0.0
    %156 = vmatpush1.msra.mxu0 0.0
    %157 = vmatprep.subr.mxu0 0.0
    %158 = vmatpush1.msra.mxu0 0.0
    %159 = vmatprep.subr.mxu0 0.0
    %160 = vmatpush1.msra.mxu0 0.0
    %161 = vmatprep.subr.mxu0 0.0
    %162 = vmatpush1.msra.mxu0 0.0
    %163 = vmatprep.subr.mxu0 0.0
    %164 = vmatpush1.msra.mxu0 0.0
    %165 = vmatprep.subr.mxu0 0.0
    %166 = vmatpush1.msra.mxu0 0.0
    %167 = vmatprep.subr.mxu0 0.0
    %168 = vmatpush1.msra.mxu0 0.0
    %169 = vmatprep.subr.mxu0 0.0
    %170 = vmatpush1.msra.mxu0 0.0
    %171 = vmatprep.subr.mxu0 0.0
    %172 = vmatpush1.msra.mxu0 0.0
    %173 = vmatprep.subr.mxu0 0.0
    %174 = vmatpush1.msra.mxu0 0.0
    %175 = vmatprep.subr.mxu0 0.0
    %176 = vmatpush1.msra.mxu0 0.0
    %177 = vmatprep.subr.mxu0 0.0
    %178 = vmatpush1.msra.mxu0 0.0
    %179 = vmatprep.subr.mxu0 0.0
    %180 = vmatpush1.msra.mxu0 0.0
    %181 = vmatprep.subr.mxu0 0.0
    %182 = vmatpush1.msra.mxu0 0.0
    %183 = vmatprep.subr.mxu0 0.0
    %184 = vmatpush1.msra.mxu0 0.0
    %185 = vmatprep.subr.mxu0 0.0
    %186 = vmatpush1.msra.mxu0 0.0
    %187 = vmatprep.subr.mxu0 0.0
    %188 = vmatpush1.msra.mxu0 0.0
    %189 = vmatprep.subr.mxu0 0.0
    %190 = vmatpush1.msra.mxu0 0.0
    %191 = vmatprep.subr.mxu0 0.0
    %192 = vmatpush1.msra.mxu0 0.0
    %193 = vmatprep.subr.mxu0 0.0
    %194 = vmatpush1.msra.mxu0 0.0
    %195 = vmatprep.mubr.f32.mxu0 0.0
    %196 = vmatmul.mubr.f32.gmra.mrb[0].mxu0 %v129
    %v197 = vpop.f32.mrb[0].mxu0
    %v198 = vadd.f32 0.0, %v197
    %v199 = vpop.f32.mrb[0].mxu0
    %200 = vdwg.mxu0
    %v202 = vsel %vm127, %v198, 0
    %204 = vmatprep.subr.mxu0 %v120
    %205 = vmatpush1.msra.mxu0 %v119
    %206 = vmatprep.subr.mxu0 %v122
    %207 = vmatpush1.msra.mxu0 %v121
    %208 = vmatprep.subr.mxu0 %v124
    %209 = vmatpush1.msra.mxu0 %v123
    %210 = vmatprep.subr.mxu0 %v126
    %211 = vmatpush1.msra.mxu0 %v125
    %212 = vmatprep.subr.mxu0 0.0
    %213 = vmatpush1.msra.mxu0 0.0
    %214 = vmatprep.subr.mxu0 0.0
    %215 = vmatpush1.msra.mxu0 0.0
    %216 = vmatprep.subr.mxu0 0.0
    %217 = vmatpush1.msra.mxu0 0.0
    %218 = vmatprep.subr.mxu0 0.0
    %219 = vmatpush1.msra.mxu0 0.0
    %220 = vmatprep.subr.mxu0 0.0
    %221 = vmatpush1.msra.mxu0 0.0
    %222 = vmatprep.subr.mxu0 0.0
    %223 = vmatpush1.msra.mxu0 0.0
    %224 = vmatprep.subr.mxu0 0.0
    %225 = vmatpush1.msra.mxu0 0.0
    %226 = vmatprep.subr.mxu0 0.0
    %227 = vmatpush1.msra.mxu0 0.0
    %228 = vmatprep.subr.mxu0 0.0
    %229 = vmatpush1.msra.mxu0 0.0
    %230 = vmatprep.subr.mxu0 0.0
    %231 = vmatpush1.msra.mxu0 0.0
    %232 = vmatprep.subr.mxu0 0.0
    %233 = vmatpush1.msra.mxu0 0.0
    %234 = vmatprep.subr.mxu0 0.0
    %235 = vmatpush1.msra.mxu0 0.0
    %236 = vmatprep.subr.mxu0 0.0
    %237 = vmatpush1.msra.mxu0 0.0
    %238 = vmatprep.subr.mxu0 0.0
    %239 = vmatpush1.msra.mxu0 0.0
    %240 = vmatprep.subr.mxu0 0.0
    %241 = vmatpush1.msra.mxu0 0.0
    %242 = vmatprep.subr.mxu0 0.0
    %243 = vmatpush1.msra.mxu0 0.0
    %244 = vmatprep.subr.mxu0 0.0
    %245 = vmatpush1.msra.mxu0 0.0
    %246 = vmatprep.subr.mxu0 0.0
    %247 = vmatpush1.msra.mxu0 0.0
    %248 = vmatprep.subr.mxu0 0.0
    %249 = vmatpush1.msra.mxu0 0.0
    %250 = vmatprep.subr.mxu0 0.0
    %251 = vmatpush1.msra.mxu0 0.0
    %252 = vmatprep.subr.mxu0 0.0
    %253 = vmatpush1.msra.mxu0 0.0
    %254 = vmatprep.subr.mxu0 0.0
    %255 = vmatpush1.msra.mxu0 0.0
    %256 = vmatprep.subr.mxu0 0.0
    %257 = vmatpush1.msra.mxu0 0.0
    %258 = vmatprep.subr.mxu0 0.0
    %259 = vmatpush1.msra.mxu0 0.0
    %260 = vmatprep.subr.mxu0 0.0
    %261 = vmatpush1.msra.mxu0 0.0
    %262 = vmatprep.subr.mxu0 0.0
    %263 = vmatpush1.msra.mxu0 0.0
    %264 = vmatprep.subr.mxu0 0.0
    %265 = vmatpush1.msra.mxu0 0.0
    %266 = vmatprep.subr.mxu0 0.0
    %267 = vmatpush1.msra.mxu0 0.0
    %268 = vmatprep.mubr.f32.mxu0 0.0
    %269 = vmatmul.mubr.f32.gmra.mrb[0].mxu0 %v202
    %v270 = vpop.f32.mrb[0].mxu0
    %v271 = vadd.f32 0.0, %v270
    %v272 = vpop.f32.mrb[0].mxu0
    %v273 = vadd.f32 0.0, %v272
    %274 = vdwg.mxu0
    %v277 = vunpack.c.l.s4 1983009808
    %v278 = vunpack.c.0.s8 %v277
    %v279 = vlaneseq
    %v280 = vshrl.u32 %v279, 7
    %v281 = vsub.s32 %v278, %v280
    %v282 = vrot.slane %v44, %v281
    %v283 = vcombine.high %v282, %v282
    %v286 = vmul.f32 %v271, %v282
    %v287 = vmul.f32 %v273, %v283
    %288 = vmatprep.subr.mxu0 0.0
    %289 = vmatpush1.msra.mxu0 %v53
    %290 = vmatprep.subr.mxu0 0.0
    %291 = vmatpush1.msra.mxu0 %v54
    %292 = vmatprep.subr.mxu0 0.0
    %293 = vmatpush1.msra.mxu0 %v55
    %294 = vmatprep.subr.mxu0 0.0
    %295 = vmatpush1.msra.mxu0 %v56
    %296 = vmatprep.subr.mxu0 0.0
    %297 = vmatpush1.msra.mxu0 %v57
    %298 = vmatprep.subr.mxu0 0.0
    %299 = vmatpush1.msra.mxu0 %v58
    %300 = vmatprep.subr.mxu0 0.0
    %301 = vmatpush1.msra.mxu0 %v59
    %302 = vmatprep.subr.mxu0 0.0
    %303 = vmatpush1.msra.mxu0 %v60
    %304 = vmatprep.subr.mxu0 0.0
    %305 = vmatpush1.msra.mxu0 %v61
    %306 = vmatprep.subr.mxu0 0.0
    %307 = vmatpush1.msra.mxu0 %v62
    %308 = vmatprep.subr.mxu0 0.0
    %309 = vmatpush1.msra.mxu0 %v63
    %310 = vmatprep.subr.mxu0 0.0
    %311 = vmatpush1.msra.mxu0 %v64
    %312 = vmatprep.subr.mxu0 0.0
    %313 = vmatpush1.msra.mxu0 %v65
    %314 = vmatprep.subr.mxu0 0.0
    %315 = vmatpush1.msra.mxu0 %v66
    %316 = vmatprep.subr.mxu0 0.0
    %317 = vmatpush1.msra.mxu0 %v67
    %318 = vmatprep.subr.mxu0 0.0
    %319 = vmatpush1.msra.mxu0 %v68
    %320 = vmatprep.subr.mxu0 0.0
    %321 = vmatpush1.msra.mxu0 %v69
    %322 = vmatprep.subr.mxu0 0.0
    %323 = vmatpush1.msra.mxu0 %v70
    %324 = vmatprep.subr.mxu0 0.0
    %325 = vmatpush1.msra.mxu0 %v71
    %326 = vmatprep.subr.mxu0 0.0
    %327 = vmatpush1.msra.mxu0 %v72
    %328 = vmatprep.subr.mxu0 0.0
    %329 = vmatpush1.msra.mxu0 %v73
    %330 = vmatprep.subr.mxu0 0.0
    %331 = vmatpush1.msra.mxu0 %v74
    %332 = vmatprep.subr.mxu0 0.0
    %333 = vmatpush1.msra.mxu0 %v75
    %334 = vmatprep.subr.mxu0 0.0
    %335 = vmatpush1.msra.mxu0 %v76
    %336 = vmatprep.subr.mxu0 0.0
    %337 = vmatpush1.msra.mxu0 %v77
    %338 = vmatprep.subr.mxu0 0.0
    %339 = vmatpush1.msra.mxu0 %v78
    %340 = vmatprep.subr.mxu0 0.0
    %341 = vmatpush1.msra.mxu0 %v79
    %342 = vmatprep.subr.mxu0 0.0
    %343 = vmatpush1.msra.mxu0 %v80
    %344 = vmatprep.subr.mxu0 0.0
    %345 = vmatpush1.msra.mxu0 %v81
    %346 = vmatprep.subr.mxu0 0.0
    %347 = vmatpush1.msra.mxu0 %v82
    %348 = vmatprep.subr.mxu0 0.0
    %349 = vmatpush1.msra.mxu0 %v83
    %350 = vmatprep.subr.mxu0 0.0
    %351 = vmatpush1.msra.mxu0 %v84
    %352 = vmatprep.mubr.f32.mxu0 %v287
    %353 = vmatmul.mubr.f32.gmra.mrb[0].mxu0 %v286
    %v354 = vpop.f32.mrb[0].mxu0
    %v355 = vadd.f32 0.0, %v354
    %v356 = vpop.f32.mrb[0].mxu0
    %357 = vdwg.mxu0
    %v358 = vsel %vm47, %v355, -inf
    %vm359 = vcmask 58368
    %v360 = vsel %vm359, %v358, -inf
    %361 = vmax.xlane.f32.xlu0 %v360
    %v362 = vpop.xlane.xlu0 %361
    %v363 = vsub.f32 %v358, %v362
    %v364 = vsel %vm47, %v363, -inf
    %v365 = vmul.f32 %v364, 1.442695
    %v366 = vpow.pop %v365
    %v367 = vsel %vm359, %v366, 0.0
    %368 = vadd.xlane.f32.xlu0 %v367
    %v369 = vpop.xlane.xlu0 %368
    %v370 = vrcp.pop %v369
    %v371 = vmul.f32 %v366, %v370
    %v372 = vsel %vm47, %v371, 0.0
    %vm373 = vcmask 64512
    %v375 = vsel %vm373, %v372, 0
    %377 = vmatprep.subr.mxu0 %v86
    %378 = vmatpush1.msra.mxu0 %v85
    %379 = vmatprep.subr.mxu0 0.0
    %380 = vmatpush1.msra.mxu0 0.0
    %381 = vmatprep.subr.mxu0 0.0
    %382 = vmatpush1.msra.mxu0 0.0
    %383 = vmatprep.subr.mxu0 0.0
    %384 = vmatpush1.msra.mxu0 0.0
    %385 = vmatprep.subr.mxu0 0.0
    %386 = vmatpush1.msra.mxu0 0.0
    %387 = vmatprep.subr.mxu0 0.0
    %388 = vmatpush1.msra.mxu0 0.0
    %389 = vmatprep.subr.mxu0 0.0
    %390 = vmatpush1.msra.mxu0 0.0
    %391 = vmatprep.subr.mxu0 0.0
    %392 = vmatpush1.msra.mxu0 0.0
    %393 = vmatprep.subr.mxu0 0.0
    %394 = vmatpush1.msra.mxu0 0.0
    %395 = vmatprep.subr.mxu0 0.0
    %396 = vmatpush1.msra.mxu0 0.0
    %397 = vmatprep.subr.mxu0 0.0
    %398 = vmatpush1.msra.mxu0 0.0
    %399 = vmatprep.subr.mxu0 0.0
    %400 = vmatpush1.msra.mxu0 0.0
    %401 = vmatprep.subr.mxu0 0.0
    %402 = vmatpush1.msra.mxu0 0.0
    %403 = vmatprep.subr.mxu0 0.0
    %404 = vmatpush1.msra.mxu0 0.0
    %405 = vmatprep.subr.mxu0 0.0
    %406 = vmatpush1.msra.mxu0 0.0
    %407 = vmatprep.subr.mxu0 0.0
    %408 = vmatpush1.msra.mxu0 0.0
    %409 = vmatprep.subr.mxu0 0.0
    %410 = vmatpush1.msra.mxu0 0.0
    %411 = vmatprep.subr.mxu0 0.0
    %412 = vmatpush1.msra.mxu0 0.0
    %413 = vmatprep.subr.mxu0 0.0
    %414 = vmatpush1.msra.mxu0 0.0
    %415 = vmatprep.subr.mxu0 0.0
    %416 = vmatpush1.msra.mxu0 0.0
    %417 = vmatprep.subr.mxu0 0.0
    %418 = vmatpush1.msra.mxu0 0.0
    %419 = vmatprep.subr.mxu0 0.0
    %420 = vmatpush1.msra.mxu0 0.0
    %421 = vmatprep.subr.mxu0 0.0
    %422 = vmatpush1.msra.mxu0 0.0
    %423 = vmatprep.subr.mxu0 0.0
    %424 = vmatpush1.msra.mxu0 0.0
    %425 = vmatprep.subr.mxu0 0.0
    %426 = vmatpush1.msra.mxu0 0.0
    %427 = vmatprep.subr.mxu0 0.0
    %428 = vmatpush1.msra.mxu0 0.0
    %429 = vmatprep.subr.mxu0 0.0
    %430 = vmatpush1.msra.mxu0 0.0
    %431 = vmatprep.subr.mxu0 0.0
    %432 = vmatpush1.msra.mxu0 0.0
    %433 = vmatprep.subr.mxu0 0.0
    %434 = vmatpush1.msra.mxu0 0.0
    %435 = vmatprep.subr.mxu0 0.0
    %436 = vmatpush1.msra.mxu0 0.0
    %437 = vmatprep.subr.mxu0 0.0
    %438 = vmatpush1.msra.mxu0 0.0
    %439 = vmatprep.subr.mxu0 0.0
    %440 = vmatpush1.msra.mxu0 0.0
    %441 = vmatprep.mubr.f32.mxu0 0.0
    %442 = vmatmul.mubr.f32.gmra.mrb[0].mxu0 %v375
    %v443 = vpop.f32.mrb[0].mxu0
    %v444 = vadd.f32 0.0, %v443
    %v445 = vpop.f32.mrb[0].mxu0
    %v446 = vadd.f32 0.0, %v445
    %447 = vdwg.mxu0
    %v448 = vmul.f32 %v444, %v282
    %v449 = vmul.f32 %v446, %v283
    %450 = vmatprep.subr.mxu0 0.0
    %451 = vmatpush1.msra.mxu0 %v87
    %452 = vmatprep.subr.mxu0 0.0
    %453 = vmatpush1.msra.mxu0 %v88
    %454 = vmatprep.subr.mxu0 0.0
    %455 = vmatpush1.msra.mxu0 %v89
    %456 = vmatprep.subr.mxu0 0.0
    %457 = vmatpush1.msra.mxu0 %v90
    %458 = vmatprep.subr.mxu0 0.0
    %459 = vmatpush1.msra.mxu0 %v91
    %460 = vmatprep.subr.mxu0 0.0
    %461 = vmatpush1.msra.mxu0 %v92
    %462 = vmatprep.subr.mxu0 0.0
    %463 = vmatpush1.msra.mxu0 %v93
    %464 = vmatprep.subr.mxu0 0.0
    %465 = vmatpush1.msra.mxu0 %v94
    %466 = vmatprep.subr.mxu0 0.0
    %467 = vmatpush1.msra.mxu0 %v95
    %468 = vmatprep.subr.mxu0 0.0
    %469 = vmatpush1.msra.mxu0 %v96
    %470 = vmatprep.subr.mxu0 0.0
    %471 = vmatpush1.msra.mxu0 %v97
    %472 = vmatprep.subr.mxu0 0.0
    %473 = vmatpush1.msra.mxu0 %v98
    %474 = vmatprep.subr.mxu0 0.0
    %475 = vmatpush1.msra.mxu0 %v99
    %476 = vmatprep.subr.mxu0 0.0
    %477 = vmatpush1.msra.mxu0 %v100
    %478 = vmatprep.subr.mxu0 0.0
    %479 = vmatpush1.msra.mxu0 %v101
    %480 = vmatprep.subr.mxu0 0.0
    %481 = vmatpush1.msra.mxu0 %v102
    %482 = vmatprep.subr.mxu0 0.0
    %483 = vmatpush1.msra.mxu0 %v103
    %484 = vmatprep.subr.mxu0 0.0
    %485 = vmatpush1.msra.mxu0 %v104
    %486 = vmatprep.subr.mxu0 0.0
    %487 = vmatpush1.msra.mxu0 %v105
    %488 = vmatprep.subr.mxu0 0.0
    %489 = vmatpush1.msra.mxu0 %v106
    %490 = vmatprep.subr.mxu0 0.0
    %491 = vmatpush1.msra.mxu0 %v107
    %492 = vmatprep.subr.mxu0 0.0
    %493 = vmatpush1.msra.mxu0 %v108
    %494 = vmatprep.subr.mxu0 0.0
    %495 = vmatpush1.msra.mxu0 %v109
    %496 = vmatprep.subr.mxu0 0.0
    %497 = vmatpush1.msra.mxu0 %v110
    %498 = vmatprep.subr.mxu0 0.0
    %499 = vmatpush1.msra.mxu0 %v111
    %500 = vmatprep.subr.mxu0 0.0
    %501 = vmatpush1.msra.mxu0 %v112
    %502 = vmatprep.subr.mxu0 0.0
    %503 = vmatpush1.msra.mxu0 %v113
    %504 = vmatprep.subr.mxu0 0.0
    %505 = vmatpush1.msra.mxu0 %v114
    %506 = vmatprep.subr.mxu0 0.0
    %507 = vmatpush1.msra.mxu0 %v115
    %508 = vmatprep.subr.mxu0 0.0
    %509 = vmatpush1.msra.mxu0 %v116
    %510 = vmatprep.subr.mxu0 0.0
    %511 = vmatpush1.msra.mxu0 %v117
    %512 = vmatprep.subr.mxu0 0.0
    %513 = vmatpush1.msra.mxu0 %v118
    %514 = vmatprep.mubr.f32.mxu0 %v449
    %515 = vmatmul.mubr.f32.gmra.mrb[0].mxu0 %v448
    %v516 = vpop.f32.mrb[0].mxu0
    %v517 = vadd.f32 0.0, %v516
    %v518 = vpop.f32.mrb[0].mxu0
    %519 = vdwg.mxu0
    %v520 = vld [vmem:[%s9] sm:$0x1]
    %v521 = vld [vmem:[%s10] sm:$0x1]
    %v523 = vsel %vm127, %v521, 0
    %v526 = vsel %vm127, %v517, 0
    %528 = vmatprep.subr.mxu0 0.0
    %529 = vmatpush1.xpose.msra.mxu0 %v526
    %530 = vmatprep.subr.mxu0 0.0
    %531 = vmatpush1.xpose.msra.mxu0 0.0
    %532 = vmatprep.subr.mxu0 0.0
    %533 = vmatpush1.xpose.msra.mxu0 0.0
    %534 = vmatprep.subr.mxu0 0.0
    %535 = vmatpush1.xpose.msra.mxu0 0.0
    %536 = vmatprep.subr.mxu0 0.0
    %537 = vmatpush1.xpose.msra.mxu0 0.0
    %538 = vmatprep.subr.mxu0 0.0
    %539 = vmatpush1.xpose.msra.mxu0 0.0
    %540 = vmatprep.subr.mxu0 0.0
    %541 = vmatpush1.xpose.msra.mxu0 0.0
    %542 = vmatprep.subr.mxu0 0.0
    %543 = vmatpush1.xpose.msra.mxu0 0.0
    %544 = vmatprep.subr.mxu0 0.0
    %545 = vmatpush1.xpose.msra.mxu0 0.0
    %546 = vmatprep.subr.mxu0 0.0
    %547 = vmatpush1.xpose.msra.mxu0 0.0
    %548 = vmatprep.subr.mxu0 0.0
    %549 = vmatpush1.xpose.msra.mxu0 0.0
    %550 = vmatprep.subr.mxu0 0.0
    %551 = vmatpush1.xpose.msra.mxu0 0.0
    %552 = vmatprep.subr.mxu0 0.0
    %553 = vmatpush1.xpose.msra.mxu0 0.0
    %554 = vmatprep.subr.mxu0 0.0
    %555 = vmatpush1.xpose.msra.mxu0 0.0
    %556 = vmatprep.subr.mxu0 0.0
    %557 = vmatpush1.xpose.msra.mxu0 0.0
    %558 = vmatprep.subr.mxu0 0.0
    %559 = vmatpush1.xpose.msra.mxu0 0.0
    %560 = vmatprep.subr.mxu0 0.0
    %561 = vmatpush1.xpose.msra.mxu0 0.0
    %562 = vmatprep.subr.mxu0 0.0
    %563 = vmatpush1.xpose.msra.mxu0 0.0
    %564 = vmatprep.subr.mxu0 0.0
    %565 = vmatpush1.xpose.msra.mxu0 0.0
    %566 = vmatprep.subr.mxu0 0.0
    %567 = vmatpush1.xpose.msra.mxu0 0.0
    %568 = vmatprep.subr.mxu0 0.0
    %569 = vmatpush1.xpose.msra.mxu0 0.0
    %570 = vmatprep.subr.mxu0 0.0
    %571 = vmatpush1.xpose.msra.mxu0 0.0
    %572 = vmatprep.subr.mxu0 0.0
    %573 = vmatpush1.xpose.msra.mxu0 0.0
    %574 = vmatprep.subr.mxu0 0.0
    %575 = vmatpush1.xpose.msra.mxu0 0.0
    %576 = vmatprep.subr.mxu0 0.0
    %577 = vmatpush1.xpose.msra.mxu0 0.0
    %578 = vmatprep.subr.mxu0 0.0
    %579 = vmatpush1.xpose.msra.mxu0 0.0
    %580 = vmatprep.subr.mxu0 0.0
    %581 = vmatpush1.xpose.msra.mxu0 0.0
    %582 = vmatprep.subr.mxu0 0.0
    %583 = vmatpush1.xpose.msra.mxu0 0.0
    %584 = vmatprep.subr.mxu0 0.0
    %585 = vmatpush1.xpose.msra.mxu0 0.0
    %586 = vmatprep.subr.mxu0 0.0
    %587 = vmatpush1.xpose.msra.mxu0 0.0
    %588 = vmatprep.subr.mxu0 0.0
    %589 = vmatpush1.xpose.msra.mxu0 0.0
    %590 = vmatprep.subr.mxu0 0.0
    %591 = vmatpush1.xpose.msra.mxu0 0.0
    %592 = vmatprep.mubr.f32.mxu0 0.0
    %593 = vmatmul.mubr.f32.gmra.mrb[0].mxu0 %v523
    %v594 = vpop.f32.mrb[0].mxu0
    %v595 = vadd.f32 0.0, %v594
    %v596 = vpop.f32.mrb[0].mxu0
    %597 = vdwg.mxu0
    %v599 = vsel %vm127, %v520, 0
    %v602 = vsel %vm127, %v43, 0
    %604 = vmatprep.subr.mxu0 0.0
    %605 = vmatpush1.xpose.msra.mxu0 %v602
    %606 = vmatprep.subr.mxu0 0.0
    %607 = vmatpush1.xpose.msra.mxu0 0.0
    %608 = vmatprep.subr.mxu0 0.0
    %609 = vmatpush1.xpose.msra.mxu0 0.0
    %610 = vmatprep.subr.mxu0 0.0
    %611 = vmatpush1.xpose.msra.mxu0 0.0
    %612 = vmatprep.subr.mxu0 0.0
    %613 = vmatpush1.xpose.msra.mxu0 0.0
    %614 = vmatprep.subr.mxu0 0.0
    %615 = vmatpush1.xpose.msra.mxu0 0.0
    %616 = vmatprep.subr.mxu0 0.0
    %617 = vmatpush1.xpose.msra.mxu0 0.0
    %618 = vmatprep.subr.mxu0 0.0
    %619 = vmatpush1.xpose.msra.mxu0 0.0
    %620 = vmatprep.subr.mxu0 0.0
    %621 = vmatpush1.xpose.msra.mxu0 0.0
    %622 = vmatprep.subr.mxu0 0.0
    %623 = vmatpush1.xpose.msra.mxu0 0.0
    %624 = vmatprep.subr.mxu0 0.0
    %625 = vmatpush1.xpose.msra.mxu0 0.0
    %626 = vmatprep.subr.mxu0 0.0
    %627 = vmatpush1.xpose.msra.mxu0 0.0
    %628 = vmatprep.subr.mxu0 0.0
    %629 = vmatpush1.xpose.msra.mxu0 0.0
    %630 = vmatprep.subr.mxu0 0.0
    %631 = vmatpush1.xpose.msra.mxu0 0.0
    %632 = vmatprep.subr.mxu0 0.0
    %633 = vmatpush1.xpose.msra.mxu0 0.0
    %634 = vmatprep.subr.mxu0 0.0
    %635 = vmatpush1.xpose.msra.mxu0 0.0
    %636 = vmatprep.subr.mxu0 0.0
    %637 = vmatpush1.xpose.msra.mxu0 0.0
    %638 = vmatprep.subr.mxu0 0.0
    %639 = vmatpush1.xpose.msra.mxu0 0.0
    %640 = vmatprep.subr.mxu0 0.0
    %641 = vmatpush1.xpose.msra.mxu0 0.0
    %642 = vmatprep.subr.mxu0 0.0
    %643 = vmatpush1.xpose.msra.mxu0 0.0
    %644 = vmatprep.subr.mxu0 0.0
    %645 = vmatpush1.xpose.msra.mxu0 0.0
    %646 = vmatprep.subr.mxu0 0.0
    %647 = vmatpush1.xpose.msra.mxu0 0.0
    %648 = vmatprep.subr.mxu0 0.0
    %649 = vmatpush1.xpose.msra.mxu0 0.0
    %650 = vmatprep.subr.mxu0 0.0
    %651 = vmatpush1.xpose.msra.mxu0 0.0
    %652 = vmatprep.subr.mxu0 0.0
    %653 = vmatpush1.xpose.msra.mxu0 0.0
    %654 = vmatprep.subr.mxu0 0.0
    %655 = vmatpush1.xpose.msra.mxu0 0.0
    %656 = vmatprep.subr.mxu0 0.0
    %657 = vmatpush1.xpose.msra.mxu0 0.0
    %658 = vmatprep.subr.mxu0 0.0
    %659 = vmatpush1.xpose.msra.mxu0 0.0
    %660 = vmatprep.subr.mxu0 0.0
    %661 = vmatpush1.xpose.msra.mxu0 0.0
    %662 = vmatprep.subr.mxu0 0.0
    %663 = vmatpush1.xpose.msra.mxu0 0.0
    %664 = vmatprep.subr.mxu0 0.0
    %665 = vmatpush1.xpose.msra.mxu0 0.0
    %666 = vmatprep.subr.mxu0 0.0
    %667 = vmatpush1.xpose.msra.mxu0 0.0
    %668 = vmatprep.mubr.f32.mxu0 0.0
    %669 = vmatmul.mubr.f32.gmra.mrb[0].mxu0 %v599
    %v670 = vpop.f32.mrb[0].mxu0
    %v671 = vadd.f32 %v595, %v670
    %v672 = vpop.f32.mrb[0].mxu0
    %673 = vdwg.mxu0
    %s674 = sld [smem:[#allocation2]]
    %v675 = vstv %s674
    %v676 = vadd.f32 %v671, %v675
    %vm677 = vcmask 8192
    %678 = vst.msk [vmem:[#allocation3] sm:$0x1] %vm677, %v676
    // Predicated region
    $region50: #{eos_generator.1} parent=1 // pred_check
      _
    $region51: #{eos_generator.1} parent=1 // pred_check_branch
      %680 = sbr.rel (0) target = $region53
    $region52: #{eos_generator.1} parent=1 // pred_region
      %s682 = ssub.s32 16, 16
      %683 = vsyncadd [#allocation4], %s682
      %s685 = sshll.u32 [#allocation3], 4
      %s686 = int_to_ptr.vmem [resolvable:$true] %s685
      %688 = dma.vmem_to_hbm [thread:$0]  %s686, 16, %s12, [#allocation4]
    $region53: #{eos_generator.1} parent=1 // pred_fallthru
      _
    // Predicated region
    $region54: #{eos_generator.1} parent=1 // pred_check
      _
    $region55: #{eos_generator.1} parent=1 // pred_check_branch
      %690 = sbr.rel (0) target = $region57
    $region56: #{eos_generator.1} parent=1 // pred_region
      %691 = dma.done [#allocation4], 16
    $region57: #{eos_generator.1} parent=1 // pred_fallthru
      _
    %692 = vsyncpa [#allocation4], 1

</llo_original>
